<compile_context>
chip_gen: v7x
topology: tpu7x:2x2x1
jax: 0.10.0
libtpu: 0.0.40
codegen_flags: <defaults>
</compile_context>

<pallas_src>
import functools

import jax
import jax.numpy as jnp
from jax import lax
from jax.experimental import pallas as pl
from jax.experimental.pallas import tpu as pltpu


def _layer_norm_kernel(x_ref, gamma_ref, beta_ref, out_ref, *, eps):
    """x_ref/out_ref: (C, bt) VMEM; gamma_ref/beta_ref: (C, 1) f32."""
    x = x_ref[...].astype(jnp.float32)                    # (C, bt)
    mean = jnp.mean(x, axis=0, keepdims=True)             # (1, bt) sublane reduce
    xc = x - mean
    var = jnp.mean(xc * xc, axis=0, keepdims=True)        # biased, like F.layer_norm
    inv = lax.rsqrt(var + eps)                            # EUP rsqrt
    y = xc * inv * gamma_ref[...] + beta_ref[...]         # (C,1) broadcasts over lanes
    out_ref[...] = y.astype(out_ref.dtype)


def layer_norm_pallas(x_bct, gamma, beta, *, eps=1e-5, block_t=2048):
    """x_bct: (B, C, T). gamma/beta: (C,). Returns (B, C, T)."""
    B, C, T = x_bct.shape

    # Lane tile along T: full extent for short sequences, otherwise a
    # lane-dense multiple of 128 (ragged last block is masked by Pallas).
    if T <= block_t:
        bt = T
    else:
        bt = block_t  # multiple of 128
    num_t_blocks = pl.cdiv(T, bt)

    gamma_2d = gamma.reshape(C, 1).astype(jnp.float32)
    beta_2d = beta.reshape(C, 1).astype(jnp.float32)

    kernel = functools.partial(_layer_norm_kernel, eps=eps)

    itemsize = jnp.dtype(x_bct.dtype).itemsize
    cost = pl.CostEstimate(
        flops=int(10 * B * C * T),
        transcendentals=int(B * T),
        bytes_accessed=int(2 * B * C * T * itemsize + 2 * C * 4),
    )

    return pl.pallas_call(
        kernel,
        out_shape=jax.ShapeDtypeStruct((B, C, T), x_bct.dtype),
        grid=(B, num_t_blocks),
        in_specs=[
            pl.BlockSpec((pl.Squeezed(), C, bt), lambda b, t: (b, 0, t)),
            pl.BlockSpec((C, 1), lambda b, t: (0, 0)),
            pl.BlockSpec((C, 1), lambda b, t: (0, 0)),
        ],
        out_specs=pl.BlockSpec((pl.Squeezed(), C, bt), lambda b, t: (b, 0, t)),
        compiler_params=pltpu.CompilerParams(
            dimension_semantics=("parallel", "parallel")),
        cost_estimate=cost,
    )(x_bct, gamma_2d, beta_2d)


def layer_norm_reference(x_bct, gamma, beta, eps=1e-5):
    """Pure-JAX reference mirroring the PyTorch forward."""
    x = jnp.transpose(x_bct, (0, 2, 1))                    # (B, T, C)
    mean = jnp.mean(x, axis=-1, keepdims=True)
    var = jnp.mean((x - mean) ** 2, axis=-1, keepdims=True)
    y = (x - mean) / jnp.sqrt(var + eps) * gamma + beta
    return jnp.transpose(y, (0, 2, 1))


if __name__ == "__main__":
    # Small shapes consistent with the module: VISinger2 hidden channels ~192.
    B, C, T = 2, 192, 16
    eps = 1e-5

    key = jax.random.PRNGKey(0)
    k_x, k_g, k_b = jax.random.split(key, 3)

    x_bct = jax.random.normal(k_x, (B, C, T), dtype=jnp.float32)
    # Parameters as if trained (init is ones/zeros; perturb to exercise them).
    gamma = 1.0 + 0.1 * jax.random.normal(k_g, (C,), dtype=jnp.float32)
    beta = 0.1 * jax.random.normal(k_b, (C,), dtype=jnp.float32)

    out = layer_norm_pallas(x_bct, gamma, beta, eps=eps)
    out = jax.block_until_ready(out)

    ref = layer_norm_reference(x_bct, gamma, beta, eps=eps)

    assert out.shape == (B, C, T)
    assert jnp.allclose(out, ref, atol=1e-4, rtol=1e-4), "mismatch vs reference"

    # Also exercise a T that needs lane tiling + a ragged last block.
    B2, T2 = 2, 4096 + 64
    x2 = jax.random.normal(jax.random.PRNGKey(1), (B2, C, T2), dtype=jnp.float32)
    out2 = jax.block_until_ready(layer_norm_pallas(x2, gamma, beta, eps=eps))
    ref2 = layer_norm_reference(x2, gamma, beta, eps=eps)
    assert jnp.allclose(out2, ref2, atol=1e-4, rtol=1e-4), "mismatch (tiled T)"

    print("KERNEL_OK")
</pallas_src>

<mosaic_0001>
module attributes {stable_mosaic.version = 11 : i64} {
  func.func @_layer_norm_kernel(%arg0: i32, %arg1: i32, %arg2: memref<1x192x16xf32, #tpu.memory_space<vmem>>, %arg3: memref<192x1xf32, #tpu.memory_space<vmem>>, %arg4: memref<192x1xf32, #tpu.memory_space<vmem>>, %arg5: memref<1x192x16xf32, #tpu.memory_space<vmem>>) attributes {dimension_semantics = [#tpu.dimension_semantics<parallel>, #tpu.dimension_semantics<parallel>], iteration_bounds = array<i64: 2, 1>, scalar_prefetch = 0 : i64, scratch_operands = 0 : i64, tpu.core_type = #tpu.core_type<tc>, window_params = [{transform_indices = @transform_0, window_bounds = array<i64: 1, 192, 16>}, {pipeline_mode = #tpu.pipeline_mode<synchronous>, transform_indices = @transform_1, window_bounds = array<i64: 192, 1>}, {pipeline_mode = #tpu.pipeline_mode<synchronous>, transform_indices = @transform_2, window_bounds = array<i64: 192, 1>}, {transform_indices = @transform_3, window_bounds = array<i64: 1, 192, 16>}]} {
    %c0 = arith.constant 0 : index
    %c0_0 = arith.constant 0 : index
    %c0_1 = arith.constant 0 : index
    %0 = vector.load %arg2[%c0, %c0_0, %c0_1] : memref<1x192x16xf32, #tpu.memory_space<vmem>>, vector<1x192x16xf32>
    %1 = vector.shape_cast %0 : vector<1x192x16xf32> to vector<192x16xf32>
    %cst = arith.constant dense<0.000000e+00> : vector<16xf32>
    %2 = vector.multi_reduction <add>, %1, %cst [0] : vector<192x16xf32> to vector<16xf32>
    %3 = vector.shape_cast %2 : vector<16xf32> to vector<1x16xf32>
    %cst_2 = arith.constant 1.920000e+02 : f32
    %4 = vector.broadcast %cst_2 : f32 to vector<1x16xf32>
    %5 = arith.divf %3, %4 : vector<1x16xf32>
    %6 = vector.broadcast %5 : vector<1x16xf32> to vector<192x16xf32>
    %7 = arith.subf %1, %6 : vector<192x16xf32>
    %8 = arith.mulf %7, %7 : vector<192x16xf32>
    %cst_3 = arith.constant dense<0.000000e+00> : vector<16xf32>
    %9 = vector.multi_reduction <add>, %8, %cst_3 [0] : vector<192x16xf32> to vector<16xf32>
    %10 = vector.shape_cast %9 : vector<16xf32> to vector<1x16xf32>
    %cst_4 = arith.constant 1.920000e+02 : f32
    %11 = vector.broadcast %cst_4 : f32 to vector<1x16xf32>
    %12 = arith.divf %10, %11 : vector<1x16xf32>
    %cst_5 = arith.constant 9.99999974E-6 : f32
    %13 = vector.broadcast %cst_5 : f32 to vector<1x16xf32>
    %14 = arith.addf %12, %13 : vector<1x16xf32>
    %15 = math.rsqrt %14 : vector<1x16xf32>
    %16 = vector.broadcast %15 : vector<1x16xf32> to vector<192x16xf32>
    %17 = arith.mulf %7, %16 : vector<192x16xf32>
    %c0_6 = arith.constant 0 : index
    %c0_7 = arith.constant 0 : index
    %18 = vector.load %arg3[%c0_6, %c0_7] : memref<192x1xf32, #tpu.memory_space<vmem>>, vector<192x1xf32>
    %19 = vector.broadcast %18 : vector<192x1xf32> to vector<192x16xf32>
    %20 = arith.mulf %17, %19 : vector<192x16xf32>
    %c0_8 = arith.constant 0 : index
    %c0_9 = arith.constant 0 : index
    %21 = vector.load %arg4[%c0_8, %c0_9] : memref<192x1xf32, #tpu.memory_space<vmem>>, vector<192x1xf32>
    %22 = vector.broadcast %21 : vector<192x1xf32> to vector<192x16xf32>
    %23 = arith.addf %20, %22 : vector<192x16xf32>
    %c0_10 = arith.constant 0 : index
    %c0_11 = arith.constant 0 : index
    %c0_12 = arith.constant 0 : index
    %24 = vector.load %arg5[%c0_10, %c0_11, %c0_12] : memref<1x192x16xf32, #tpu.memory_space<vmem>>, vector<1x192x16xf32>
    %25 = vector.shape_cast %24 : vector<1x192x16xf32> to vector<192x16xf32>
    %26 = vector.shape_cast %23 : vector<192x16xf32> to vector<1x192x16xf32>
    tpu.vector_store %arg5[%c0_10, %c0_11, %c0_12], %26 {strides = array<i32>} : memref<1x192x16xf32, #tpu.memory_space<vmem>>, vector<1x192x16xf32>,
    return
  }
  func.func @transform_0(%arg0: i32, %arg1: i32) -> (i32, i32, i32) {
    %c0_i32 = arith.constant 0 : i32
    %c0_i32_0 = arith.constant 0 : i32
    return %arg0, %c0_i32, %arg1 : i32, i32, i32
  }
  func.func @transform_1(%arg0: i32, %arg1: i32) -> (i32, i32) {
    %c0_i32 = arith.constant 0 : i32
    %c0_i32_0 = arith.constant 0 : i32
    %c0_i32_1 = arith.constant 0 : i32
    return %c0_i32, %c0_i32_0 : i32, i32
  }
  func.func @transform_2(%arg0: i32, %arg1: i32) -> (i32, i32) {
    %c0_i32 = arith.constant 0 : i32
    %c0_i32_0 = arith.constant 0 : i32
    %c0_i32_1 = arith.constant 0 : i32
    return %c0_i32, %c0_i32_0 : i32, i32
  }
  func.func @transform_3(%arg0: i32, %arg1: i32) -> (i32, i32, i32) {
    %c0_i32 = arith.constant 0 : i32
    %c0_i32_0 = arith.constant 0 : i32
    return %arg0, %c0_i32, %arg1 : i32, i32, i32
  }
}

</mosaic_0001>

<llo_original>
// kernel: tpu_custom_call.1
$region0: #{tpu_custom_call.1}
  #allocation0 [shape = 'u32[]', space=smem, size = 0x4, offset = 0x4, fixed_abs, tag = 'smem constant byte address 0x4 - core index']
  #allocation1 [shape = 'u32[144,128]{1,0:T(1,128)}', space=vmem, size = 0x12000, scoped, tag = 'internal scratch']
  %s0 = inlined_call_operand.vmem [shape: f32[2,192,16], index: 0, kind: input, shape index: {}]
  %s1 = inlined_call_operand.vmem [shape: f32[192,1], index: 1, kind: input, shape index: {}]
  %s2 = inlined_call_operand.vmem [shape: f32[192,1], index: 2, kind: input, shape index: {}]
  %s3 = inlined_call_operand.vmem [shape: f32[2,192,16], index: 3, kind: output, shape index: {}]
  %s4 = sld [smem:[#allocation0]]
  $region45: #{tpu_custom_call.1} parent=0
    _
  %s6 = ssub.s32 1, %s4
  %s7 = scalar_select 0, %s6, %s4
  loop: start=0, step=1, limit=4
  $region2: #{tpu_custom_call.1} parent=0 // loop_pre_header
    _
  $region3: #{tpu_custom_call.1} parent=0 // loop_header
    %s9 = sphi 0, %s13
    %p10 = scmp.ge.s32.totalorder %s9, 4
    %s16 = sphi 0, %s28
    %s17 = sphi 0, %s24
    %s18 = sphi 0, %s16
    %s19 = sphi 0, %s17
    %s20 = sphi 0, %s18
    %s21 = sphi 0, %s19
    %s33 = sphi 0, %s35
    %s36 = sphi 0, %s33
    %s37 = sphi 0, %s36
    %s53 = sphi 0, %s37
    %s57 = sphi 0, %s57
    %s59 = sphi 0, %s57
    %s60 = sphi 0, %s59
    %s74 = sphi 0, %s60
    %s78 = sphi 0, %s78
    %s80 = sphi 0, %s78
    %s81 = sphi 0, %s80
    %s95 = sphi 0, %s81
    %s103 = sphi 0, %s105
    %s106 = sphi 0, %s103
    %s107 = sphi 0, %s106
    %s123 = sphi 0, %s107
  $region4: #{tpu_custom_call.1} parent=0 // loop_header_branch
    %12 = sbr.rel (%p10) target = $region8
  $region5: #{tpu_custom_call.1} parent=0 // loop_body
    %s14 = ssub.s32 %s9, 1
    %s15 = ssub.s32 %s9, 2
    %s22 = sadd.s32 1, %s17
    %p23 = scmp.ge.s32.totalorder %s22, 1
    %s24 = scalar_select %p23, 0, %s22
    %s25 = sadd.s32 1, %s16
    %s26 = scalar_select %p23, %s25, %s16
    %p27 = scmp.ge.s32.totalorder %s26, 2
    %s28 = scalar_select %p27, 0, %s26
    %s29 = ssub.s32 %s16, %s28
    %s30 = ssub.s32 %s17, %s24
    %s31 = sor.u32 %s29, %s30
    %p32 = scmp.eq.s32.totalorder %s31, 0
    %s34 = sadd.s32 %s33, 1
    %s35 = scalar_select %p32, %s33, %s34
    %p38 = pneg %p32
    %p39 = scmp.eq.s32.totalorder %s9, 1
    %p40 = por %p38, %p39
    %p41 = scmp.ne.s32.totalorder %s33, %s36
    %p42 = scmp.eq.s32.totalorder %s9, 0
    %p43 = por %p41, %p42
    %p44 = scmp.ne.s32.totalorder %s33, %s36
    %p45 = scmp.eq.s32.totalorder %s14, 1
    %p46 = por %p44, %p45
    %p47 = scmp.ne.s32.totalorder %s36, %s37
    %p48 = scmp.eq.s32.totalorder %s14, 0
    %p49 = por %p47, %p48
    %p50 = scmp.ne.s32.totalorder %s36, %s37
    %p51 = scmp.eq.s32.totalorder %s15, 1
    %p52 = por %p50, %p51
    %p54 = scmp.ne.s32.totalorder %s37, %s53
    %p55 = scmp.eq.s32.totalorder %s15, 0
    %p56 = por %p54, %p55
    %s58 = sadd.s32 %s57, 1
    %p61 = scmp.eq.s32.totalorder %s9, 1
    %p62 = scmp.ne.s32.totalorder %s57, %s59
    %p63 = scmp.eq.s32.totalorder %s9, 0
    %p64 = por %p62, %p63
    %p65 = scmp.ne.s32.totalorder %s57, %s59
    %p66 = scmp.eq.s32.totalorder %s14, 1
    %p67 = por %p65, %p66
    %p68 = scmp.ne.s32.totalorder %s59, %s60
    %p69 = scmp.eq.s32.totalorder %s14, 0
    %p70 = por %p68, %p69
    %p71 = scmp.ne.s32.totalorder %s59, %s60
    %p72 = scmp.eq.s32.totalorder %s15, 1
    %p73 = por %p71, %p72
    %p75 = scmp.ne.s32.totalorder %s60, %s74
    %p76 = scmp.eq.s32.totalorder %s15, 0
    %p77 = por %p75, %p76
    %s79 = sadd.s32 %s78, 1
    %p82 = scmp.eq.s32.totalorder %s9, 1
    %p83 = scmp.ne.s32.totalorder %s78, %s80
    %p84 = scmp.eq.s32.totalorder %s9, 0
    %p85 = por %p83, %p84
    %p86 = scmp.ne.s32.totalorder %s78, %s80
    %p87 = scmp.eq.s32.totalorder %s14, 1
    %p88 = por %p86, %p87
    %p89 = scmp.ne.s32.totalorder %s80, %s81
    %p90 = scmp.eq.s32.totalorder %s14, 0
    %p91 = por %p89, %p90
    %p92 = scmp.ne.s32.totalorder %s80, %s81
    %p93 = scmp.eq.s32.totalorder %s15, 1
    %p94 = por %p92, %p93
    %p96 = scmp.ne.s32.totalorder %s81, %s95
    %p97 = scmp.eq.s32.totalorder %s15, 0
    %p98 = por %p96, %p97
    %s99 = ssub.s32 %s16, %s28
    %s100 = ssub.s32 %s17, %s24
    %s101 = sor.u32 %s99, %s100
    %p102 = scmp.eq.s32.totalorder %s101, 0
    %s104 = sadd.s32 %s103, 1
    %s105 = scalar_select %p102, %s103, %s104
    %p108 = pneg %p102
    %p109 = scmp.eq.s32.totalorder %s9, 1
    %p110 = por %p108, %p109
    %p111 = scmp.ne.s32.totalorder %s103, %s106
    %p112 = scmp.eq.s32.totalorder %s9, 0
    %p113 = por %p111, %p112
    %p114 = scmp.ne.s32.totalorder %s103, %s106
    %p115 = scmp.eq.s32.totalorder %s14, 1
    %p116 = por %p114, %p115
    %p117 = scmp.ne.s32.totalorder %s106, %s107
    %p118 = scmp.eq.s32.totalorder %s14, 0
    %p119 = por %p117, %p118
    %p120 = scmp.ne.s32.totalorder %s106, %s107
    %p121 = scmp.eq.s32.totalorder %s15, 1
    %p122 = por %p120, %p121
    %p124 = scmp.ne.s32.totalorder %s107, %s123
    %p125 = scmp.eq.s32.totalorder %s15, 0
    %p126 = por %p124, %p125
    %p127 = scmp.le.s32.totalorder 1, %s9
    %p128 = scmp.lt.s32.totalorder %s9, 3
    %p129 = pnand %p127, %p128
    %p130 = pneg %p129
    // Predicated region
    $region9: #{tpu_custom_call.1} parent=5 // pred_check
      _
    $region10: #{tpu_custom_call.1} parent=5 // pred_check_branch
      %132 = sbr.rel (%p129) target = $region12
    $region11: #{tpu_custom_call.1} parent=5 // pred_region
      %s133 = ssub.s32 %s9, 1
      // Predicated region
      $region13: #{tpu_custom_call.1} parent=11 // pred_check
        %p134 = pneg %p70
      $region14: #{tpu_custom_call.1} parent=11 // pred_check_branch
        %136 = sbr.rel (%p134) target = $region16
      $region15: #{tpu_custom_call.1} parent=11 // pred_region
        _
      $region16: #{tpu_custom_call.1} parent=11 // pred_fallthru
        _
      // Predicated region
      $region17: #{tpu_custom_call.1} parent=11 // pred_check
        %p137 = pneg %p91
      $region18: #{tpu_custom_call.1} parent=11 // pred_check_branch
        %139 = sbr.rel (%p137) target = $region20
      $region19: #{tpu_custom_call.1} parent=11 // pred_region
        _
      $region20: #{tpu_custom_call.1} parent=11 // pred_fallthru
        _
    $region12: #{tpu_custom_call.1} parent=5 // pred_fallthru
      _
    %p140 = scmp.lt.s32.totalorder %s9, 2
    // Predicated region
    $region21: #{tpu_custom_call.1} parent=5 // pred_check
      %p141 = pneg %p140
    $region22: #{tpu_custom_call.1} parent=5 // pred_check_branch
      %143 = sbr.rel (%p141) target = $region24
    $region23: #{tpu_custom_call.1} parent=5 // pred_region
      // Predicated region
      $region25: #{tpu_custom_call.1} parent=23 // pred_check
        %p144 = pneg %p43
      $region26: #{tpu_custom_call.1} parent=23 // pred_check_branch
        %146 = sbr.rel (%p144) target = $region28
      $region27: #{tpu_custom_call.1} parent=23 // pred_region
        %p147 = scmp.lt.s32.totalorder %s16, 1
        %s148 = scalar_select %p147, %s16, 1
        %p149 = scmp.lt.s32.totalorder %s17, 0
        %s150 = scalar_select %p149, %s17, 0
        %s151 = smul.addr %s148, 24
        %s152 = sadd.s32 %s150, %s151
        %s153 = smul.addr %s152, 8
        %s154 = scalar_lea.vmem %s0, %s153
      $region28: #{tpu_custom_call.1} parent=23 // pred_fallthru
        _
    $region24: #{tpu_custom_call.1} parent=5 // pred_fallthru
      _
    %p155 = scmp.le.s32.totalorder 1, %s9
    %p156 = scmp.lt.s32.totalorder %s9, 3
    %p157 = pnand %p155, %p156
    %p158 = pneg %p157
    // Predicated region
    $region29: #{tpu_custom_call.1} parent=5 // pred_check
      _
    $region30: #{tpu_custom_call.1} parent=5 // pred_check_branch
      %160 = sbr.rel (%p157) target = $region32
    $region31: #{tpu_custom_call.1} parent=5 // pred_region
      %s161 = ssub.s32 %s9, 1
      %p162 = scmp.lt.s32.totalorder %s18, 1
      %s163 = scalar_select %p162, %s18, 1
      %p164 = scmp.lt.s32.totalorder %s19, 0
      %s165 = scalar_select %p164, %s19, 0
      %s166 = smul.addr %s163, 24
      %s167 = sadd.s32 %s165, %s166
      %s168 = smul.addr %s167, 8
      %s169 = scalar_lea.vmem %s0, %s168
      %p170 = pneg %p49
      %p171 = pneg %p46
      %p172 = pneg %p70
      %p173 = pneg %p67
      %p174 = pneg %p91
      %p175 = pneg %p88
      %p176 = pneg %p119
      %p177 = pneg %p116
      %p178 = scmp.lt.s32.totalorder %s18, 1
      %s179 = scalar_select %p178, %s18, 1
      %p180 = scmp.lt.s32.totalorder %s19, 0
      %s181 = scalar_select %p180, %s19, 0
      %s182 = smul.addr %s179, 24
      %s183 = sadd.s32 %s181, %s182
      %s184 = smul.addr %s183, 8
      %s185 = scalar_lea.vmem %s3, %s184
      %p186 = scmp.lt.s32.totalorder %s18, 1
      %s187 = scalar_select %p186, %s18, 1
      %p188 = scmp.lt.s32.totalorder %s19, 0
      %s189 = scalar_select %p188, %s19, 0
      %s190 = smul.addr %s187, 24
      %s191 = sadd.s32 %s189, %s190
      %s192 = smul.addr %s191, 8
      %s193 = scalar_lea.vmem %s0, %s192
      %p194 = scmp.lt.s32.totalorder %s18, 1
      %s195 = scalar_select %p194, %s18, 1
      %p196 = scmp.lt.s32.totalorder %s19, 0
      %s197 = scalar_select %p196, %s19, 0
      %s198 = smul.addr %s195, 24
      %s199 = sadd.s32 %s197, %s198
      %s200 = smul.addr %s199, 8
      %s201 = scalar_lea.vmem %s3, %s200
      %v202 = vld [vmem:[%s193] sm:$0xff]
      %v203 = vld [vmem:[%s193 + $0x8] sm:$0xff]
      %v204 = vld [vmem:[%s193 + $0x10] sm:$0xff]
      %v205 = vld [vmem:[%s193 + $0x18] sm:$0xff]
      %v206 = vld [vmem:[%s193 + $0x20] sm:$0xff]
      %v207 = vld [vmem:[%s193 + $0x28] sm:$0xff]
      %v208 = vld [vmem:[%s193 + $0x30] sm:$0xff]
      %v209 = vld [vmem:[%s193 + $0x38] sm:$0xff]
      %v210 = vld [vmem:[%s193 + $0x40] sm:$0xff]
      %v211 = vld [vmem:[%s193 + $0x48] sm:$0xff]
      %v212 = vld [vmem:[%s193 + $0x50] sm:$0xff]
      %v213 = vld [vmem:[%s193 + $0x58] sm:$0xff]
      %v214 = vld [vmem:[%s193 + $0x60] sm:$0xff]
      %v215 = vld [vmem:[%s193 + $0x68] sm:$0xff]
      %v216 = vld [vmem:[%s193 + $0x70] sm:$0xff]
      %v217 = vld [vmem:[%s193 + $0x78] sm:$0xff]
      %v218 = vld [vmem:[%s193 + $0x80] sm:$0xff]
      %v219 = vld [vmem:[%s193 + $0x88] sm:$0xff]
      %v220 = vld [vmem:[%s193 + $0x90] sm:$0xff]
      %v221 = vld [vmem:[%s193 + $0x98] sm:$0xff]
      %v222 = vld [vmem:[%s193 + $0xa0] sm:$0xff]
      %v223 = vld [vmem:[%s193 + $0xa8] sm:$0xff]
      %v224 = vld [vmem:[%s193 + $0xb0] sm:$0xff]
      %v225 = vld [vmem:[%s193 + $0xb8] sm:$0xff]
      %vm226 = vcmask 130048
      %v227 = vsel %vm226, %v202, 0.0
      %v228 = vsel %vm226, %v203, 0.0
      %v229 = vadd.f32 %v227, %v228
      %v230 = vsel %vm226, %v204, 0.0
      %v231 = vadd.f32 %v229, %v230
      %v232 = vsel %vm226, %v205, 0.0
      %v233 = vadd.f32 %v231, %v232
      %v234 = vsel %vm226, %v206, 0.0
      %v235 = vadd.f32 %v233, %v234
      %v236 = vsel %vm226, %v207, 0.0
      %v237 = vadd.f32 %v235, %v236
      %v238 = vsel %vm226, %v208, 0.0
      %v239 = vadd.f32 %v237, %v238
      %v240 = vsel %vm226, %v209, 0.0
      %v241 = vadd.f32 %v239, %v240
      %v242 = vsel %vm226, %v210, 0.0
      %v243 = vadd.f32 %v241, %v242
      %v244 = vsel %vm226, %v211, 0.0
      %v245 = vadd.f32 %v243, %v244
      %v246 = vsel %vm226, %v212, 0.0
      %v247 = vadd.f32 %v245, %v246
      %v248 = vsel %vm226, %v213, 0.0
      %v249 = vadd.f32 %v247, %v248
      %v250 = vsel %vm226, %v214, 0.0
      %v251 = vadd.f32 %v249, %v250
      %v252 = vsel %vm226, %v215, 0.0
      %v253 = vadd.f32 %v251, %v252
      %v254 = vsel %vm226, %v216, 0.0
      %v255 = vadd.f32 %v253, %v254
      %v256 = vsel %vm226, %v217, 0.0
      %v257 = vadd.f32 %v255, %v256
      %v258 = vsel %vm226, %v218, 0.0
      %v259 = vadd.f32 %v257, %v258
      %v260 = vsel %vm226, %v219, 0.0
      %v261 = vadd.f32 %v259, %v260
      %v262 = vsel %vm226, %v220, 0.0
      %v263 = vadd.f32 %v261, %v262
      %v264 = vsel %vm226, %v221, 0.0
      %v265 = vadd.f32 %v263, %v264
      %v266 = vsel %vm226, %v222, 0.0
      %v267 = vadd.f32 %v265, %v266
      %v268 = vsel %vm226, %v223, 0.0
      %v269 = vadd.f32 %v267, %v268
      %v270 = vsel %vm226, %v224, 0.0
      %v271 = vadd.f32 %v269, %v270
      %v272 = vsel %vm226, %v225, 0.0
      %v273 = vadd.f32 %v271, %v272
      %v274 = vrot.slane %v273, 4
      %v275 = vadd.f32 %v273, %v274
      %v276 = vrot.slane %v275, 2
      %v277 = vadd.f32 %v275, %v276
      %v278 = vrot.slane %v277, 1
      %v279 = vadd.f32 %v277, %v278
      %v280 = vrcp.pop 192.0
      %v281 = vmul.f32 %v279, %v280
      %v282 = vsub.f32 %v202, %v281
      %v283 = vsub.f32 %v203, %v281
      %v284 = vsub.f32 %v204, %v281
      %v285 = vsub.f32 %v205, %v281
      %v286 = vsub.f32 %v206, %v281
      %v287 = vsub.f32 %v207, %v281
      %v288 = vsub.f32 %v208, %v281
      %v289 = vsub.f32 %v209, %v281
      %v290 = vsub.f32 %v210, %v281
      %v291 = vsub.f32 %v211, %v281
      %v292 = vsub.f32 %v212, %v281
      %v293 = vsub.f32 %v213, %v281
      %v294 = vsub.f32 %v214, %v281
      %v295 = vsub.f32 %v215, %v281
      %v296 = vsub.f32 %v216, %v281
      %v297 = vsub.f32 %v217, %v281
      %v298 = vsub.f32 %v218, %v281
      %v299 = vsub.f32 %v219, %v281
      %v300 = vsub.f32 %v220, %v281
      %v301 = vsub.f32 %v221, %v281
      %v302 = vsub.f32 %v222, %v281
      %v303 = vsub.f32 %v223, %v281
      %v304 = vsub.f32 %v224, %v281
      %v305 = vsub.f32 %v225, %v281
      %v306 = vmul.f32 %v282, %v282
      %v307 = vmul.f32 %v283, %v283
      %v308 = vmul.f32 %v284, %v284
      %v309 = vmul.f32 %v285, %v285
      %v310 = vmul.f32 %v286, %v286
      %v311 = vmul.f32 %v287, %v287
      %v312 = vmul.f32 %v288, %v288
      %v313 = vmul.f32 %v289, %v289
      %v314 = vmul.f32 %v290, %v290
      %v315 = vmul.f32 %v291, %v291
      %v316 = vmul.f32 %v292, %v292
      %v317 = vmul.f32 %v293, %v293
      %v318 = vmul.f32 %v294, %v294
      %v319 = vmul.f32 %v295, %v295
      %v320 = vmul.f32 %v296, %v296
      %v321 = vmul.f32 %v297, %v297
      %v322 = vmul.f32 %v298, %v298
      %v323 = vmul.f32 %v299, %v299
      %v324 = vmul.f32 %v300, %v300
      %v325 = vmul.f32 %v301, %v301
      %v326 = vmul.f32 %v302, %v302
      %v327 = vmul.f32 %v303, %v303
      %v328 = vmul.f32 %v304, %v304
      %v329 = vmul.f32 %v305, %v305
      %v330 = vsel %vm226, %v306, 0.0
      %v331 = vsel %vm226, %v307, 0.0
      %v332 = vadd.f32 %v330, %v331
      %v333 = vsel %vm226, %v308, 0.0
      %v334 = vadd.f32 %v332, %v333
      %v335 = vsel %vm226, %v309, 0.0
      %v336 = vadd.f32 %v334, %v335
      %v337 = vsel %vm226, %v310, 0.0
      %v338 = vadd.f32 %v336, %v337
      %v339 = vsel %vm226, %v311, 0.0
      %v340 = vadd.f32 %v338, %v339
      %v341 = vsel %vm226, %v312, 0.0
      %v342 = vadd.f32 %v340, %v341
      %v343 = vsel %vm226, %v313, 0.0
      %v344 = vadd.f32 %v342, %v343
      %v345 = vsel %vm226, %v314, 0.0
      %v346 = vadd.f32 %v344, %v345
      %v347 = vsel %vm226, %v315, 0.0
      %v348 = vadd.f32 %v346, %v347
      %v349 = vsel %vm226, %v316, 0.0
      %v350 = vadd.f32 %v348, %v349
      %v351 = vsel %vm226, %v317, 0.0
      %v352 = vadd.f32 %v350, %v351
      %v353 = vsel %vm226, %v318, 0.0
      %v354 = vadd.f32 %v352, %v353
      %v355 = vsel %vm226, %v319, 0.0
      %v356 = vadd.f32 %v354, %v355
      %v357 = vsel %vm226, %v320, 0.0
      %v358 = vadd.f32 %v356, %v357
      %v359 = vsel %vm226, %v321, 0.0
      %v360 = vadd.f32 %v358, %v359
      %v361 = vsel %vm226, %v322, 0.0
      %v362 = vadd.f32 %v360, %v361
      %v363 = vsel %vm226, %v323, 0.0
      %v364 = vadd.f32 %v362, %v363
      %v365 = vsel %vm226, %v324, 0.0
      %v366 = vadd.f32 %v364, %v365
      %v367 = vsel %vm226, %v325, 0.0
      %v368 = vadd.f32 %v366, %v367
      %v369 = vsel %vm226, %v326, 0.0
      %v370 = vadd.f32 %v368, %v369
      %v371 = vsel %vm226, %v327, 0.0
      %v372 = vadd.f32 %v370, %v371
      %v373 = vsel %vm226, %v328, 0.0
      %v374 = vadd.f32 %v372, %v373
      %v375 = vsel %vm226, %v329, 0.0
      %v376 = vadd.f32 %v374, %v375
      %v377 = vrot.slane %v376, 4
      %v378 = vadd.f32 %v376, %v377
      %v379 = vrot.slane %v378, 2
      %v380 = vadd.f32 %v378, %v379
      %v381 = vrot.slane %v380, 1
      %v382 = vadd.f32 %v380, %v381
      %v383 = vmul.f32 %v382, %v280
      %v384 = vadd.f32 %v383, 1e-05
      %v385 = vrsqrt.pop %v384
      %v386 = vmul.f32 %v282, %v385
      %v387 = vmul.f32 %v283, %v385
      %v388 = vmul.f32 %v284, %v385
      %v389 = vmul.f32 %v285, %v385
      %v390 = vmul.f32 %v286, %v385
      %v391 = vmul.f32 %v287, %v385
      %v392 = vmul.f32 %v288, %v385
      %v393 = vmul.f32 %v289, %v385
      %v394 = vmul.f32 %v290, %v385
      %v395 = vmul.f32 %v291, %v385
      %v396 = vmul.f32 %v292, %v385
      %v397 = vmul.f32 %v293, %v385
      %v398 = vmul.f32 %v294, %v385
      %v399 = vmul.f32 %v295, %v385
      %v400 = vmul.f32 %v296, %v385
      %v401 = vmul.f32 %v297, %v385
      %v402 = vmul.f32 %v298, %v385
      %v403 = vmul.f32 %v299, %v385
      %v404 = vmul.f32 %v300, %v385
      %v405 = vmul.f32 %v301, %v385
      %v406 = vmul.f32 %v302, %v385
      %v407 = vmul.f32 %v303, %v385
      %v408 = vmul.f32 %v304, %v385
      %v409 = vmul.f32 %v305, %v385
      %v410 = vld [vmem:[%s1] sm:$0xff]
      %v411 = vld [vmem:[%s1 + $0x8] sm:$0xff]
      %v412 = vld [vmem:[%s1 + $0x10] sm:$0xff]
      %v413 = vld [vmem:[%s1 + $0x18] sm:$0xff]
      %v414 = vld [vmem:[%s1 + $0x20] sm:$0xff]
      %v415 = vld [vmem:[%s1 + $0x28] sm:$0xff]
      %v416 = vld [vmem:[%s1 + $0x30] sm:$0xff]
      %v417 = vld [vmem:[%s1 + $0x38] sm:$0xff]
      %v418 = vld [vmem:[%s1 + $0x40] sm:$0xff]
      %v419 = vld [vmem:[%s1 + $0x48] sm:$0xff]
      %v420 = vld [vmem:[%s1 + $0x50] sm:$0xff]
      %v421 = vld [vmem:[%s1 + $0x58] sm:$0xff]
      %v422 = vld [vmem:[%s1 + $0x60] sm:$0xff]
      %v423 = vld [vmem:[%s1 + $0x68] sm:$0xff]
      %v424 = vld [vmem:[%s1 + $0x70] sm:$0xff]
      %v425 = vld [vmem:[%s1 + $0x78] sm:$0xff]
      %v426 = vld [vmem:[%s1 + $0x80] sm:$0xff]
      %v427 = vld [vmem:[%s1 + $0x88] sm:$0xff]
      %v428 = vld [vmem:[%s1 + $0x90] sm:$0xff]
      %v429 = vld [vmem:[%s1 + $0x98] sm:$0xff]
      %v430 = vld [vmem:[%s1 + $0xa0] sm:$0xff]
      %v431 = vld [vmem:[%s1 + $0xa8] sm:$0xff]
      %v432 = vld [vmem:[%s1 + $0xb0] sm:$0xff]
      %v433 = vld [vmem:[%s1 + $0xb8] sm:$0xff]
      %435 = vset.pattern.permute.xlu0 0
      %436 = vperm.xlu0 %435, %v410
      %v437 = vpop.permute.xlu0 %436
      %440 = vset.pattern.permute.xlu0 0
      %441 = vperm.xlu0 %440, %v411
      %v442 = vpop.permute.xlu0 %441
      %445 = vset.pattern.permute.xlu0 0
      %446 = vperm.xlu0 %445, %v412
      %v447 = vpop.permute.xlu0 %446
      %450 = vset.pattern.permute.xlu0 0
      %451 = vperm.xlu0 %450, %v413
      %v452 = vpop.permute.xlu0 %451
      %455 = vset.pattern.permute.xlu0 0
      %456 = vperm.xlu0 %455, %v414
      %v457 = vpop.permute.xlu0 %456
      %460 = vset.pattern.permute.xlu0 0
      %461 = vperm.xlu0 %460, %v415
      %v462 = vpop.permute.xlu0 %461
      %465 = vset.pattern.permute.xlu0 0
      %466 = vperm.xlu0 %465, %v416
      %v467 = vpop.permute.xlu0 %466
      %470 = vset.pattern.permute.xlu0 0
      %471 = vperm.xlu0 %470, %v417
      %v472 = vpop.permute.xlu0 %471
      %475 = vset.pattern.permute.xlu0 0
      %476 = vperm.xlu0 %475, %v418
      %v477 = vpop.permute.xlu0 %476
      %480 = vset.pattern.permute.xlu0 0
      %481 = vperm.xlu0 %480, %v419
      %v482 = vpop.permute.xlu0 %481
      %485 = vset.pattern.permute.xlu0 0
      %486 = vperm.xlu0 %485, %v420
      %v487 = vpop.permute.xlu0 %486
      %490 = vset.pattern.permute.xlu0 0
      %491 = vperm.xlu0 %490, %v421
      %v492 = vpop.permute.xlu0 %491
      %495 = vset.pattern.permute.xlu0 0
      %496 = vperm.xlu0 %495, %v422
      %v497 = vpop.permute.xlu0 %496
      %500 = vset.pattern.permute.xlu0 0
      %501 = vperm.xlu0 %500, %v423
      %v502 = vpop.permute.xlu0 %501
      %505 = vset.pattern.permute.xlu0 0
      %506 = vperm.xlu0 %505, %v424
      %v507 = vpop.permute.xlu0 %506
      %510 = vset.pattern.permute.xlu0 0
      %511 = vperm.xlu0 %510, %v425
      %v512 = vpop.permute.xlu0 %511
      %515 = vset.pattern.permute.xlu0 0
      %516 = vperm.xlu0 %515, %v426
      %v517 = vpop.permute.xlu0 %516
      %520 = vset.pattern.permute.xlu0 0
      %521 = vperm.xlu0 %520, %v427
      %v522 = vpop.permute.xlu0 %521
      %525 = vset.pattern.permute.xlu0 0
      %526 = vperm.xlu0 %525, %v428
      %v527 = vpop.permute.xlu0 %526
      %530 = vset.pattern.permute.xlu0 0
      %531 = vperm.xlu0 %530, %v429
      %v532 = vpop.permute.xlu0 %531
      %535 = vset.pattern.permute.xlu0 0
      %536 = vperm.xlu0 %535, %v430
      %v537 = vpop.permute.xlu0 %536
      %540 = vset.pattern.permute.xlu0 0
      %541 = vperm.xlu0 %540, %v431
      %v542 = vpop.permute.xlu0 %541
      %545 = vset.pattern.permute.xlu0 0
      %546 = vperm.xlu0 %545, %v432
      %v547 = vpop.permute.xlu0 %546
      %550 = vset.pattern.permute.xlu0 0
      %551 = vperm.xlu0 %550, %v433
      %v552 = vpop.permute.xlu0 %551
      %v554 = vmul.f32 %v386, %v437
      %v555 = vmul.f32 %v387, %v442
      %v556 = vmul.f32 %v388, %v447
      %v557 = vmul.f32 %v389, %v452
      %v558 = vmul.f32 %v390, %v457
      %v559 = vmul.f32 %v391, %v462
      %v560 = vmul.f32 %v392, %v467
      %v561 = vmul.f32 %v393, %v472
      %v562 = vmul.f32 %v394, %v477
      %v563 = vmul.f32 %v395, %v482
      %v564 = vmul.f32 %v396, %v487
      %v565 = vmul.f32 %v397, %v492
      %v566 = vmul.f32 %v398, %v497
      %v567 = vmul.f32 %v399, %v502
      %v568 = vmul.f32 %v400, %v507
      %v569 = vmul.f32 %v401, %v512
      %v570 = vmul.f32 %v402, %v517
      %v571 = vmul.f32 %v403, %v522
      %v572 = vmul.f32 %v404, %v527
      %v573 = vmul.f32 %v405, %v532
      %v574 = vmul.f32 %v406, %v537
      %v575 = vmul.f32 %v407, %v542
      %v576 = vmul.f32 %v408, %v547
      %v577 = vmul.f32 %v409, %v552
      %v578 = vld [vmem:[%s2] sm:$0xff]
      %v579 = vld [vmem:[%s2 + $0x8] sm:$0xff]
      %v580 = vld [vmem:[%s2 + $0x10] sm:$0xff]
      %v581 = vld [vmem:[%s2 + $0x18] sm:$0xff]
      %v582 = vld [vmem:[%s2 + $0x20] sm:$0xff]
      %v583 = vld [vmem:[%s2 + $0x28] sm:$0xff]
      %v584 = vld [vmem:[%s2 + $0x30] sm:$0xff]
      %v585 = vld [vmem:[%s2 + $0x38] sm:$0xff]
      %v586 = vld [vmem:[%s2 + $0x40] sm:$0xff]
      %v587 = vld [vmem:[%s2 + $0x48] sm:$0xff]
      %v588 = vld [vmem:[%s2 + $0x50] sm:$0xff]
      %v589 = vld [vmem:[%s2 + $0x58] sm:$0xff]
      %v590 = vld [vmem:[%s2 + $0x60] sm:$0xff]
      %v591 = vld [vmem:[%s2 + $0x68] sm:$0xff]
      %v592 = vld [vmem:[%s2 + $0x70] sm:$0xff]
      %v593 = vld [vmem:[%s2 + $0x78] sm:$0xff]
      %v594 = vld [vmem:[%s2 + $0x80] sm:$0xff]
      %v595 = vld [vmem:[%s2 + $0x88] sm:$0xff]
      %v596 = vld [vmem:[%s2 + $0x90] sm:$0xff]
      %v597 = vld [vmem:[%s2 + $0x98] sm:$0xff]
      %v598 = vld [vmem:[%s2 + $0xa0] sm:$0xff]
      %v599 = vld [vmem:[%s2 + $0xa8] sm:$0xff]
      %v600 = vld [vmem:[%s2 + $0xb0] sm:$0xff]
      %v601 = vld [vmem:[%s2 + $0xb8] sm:$0xff]
      %603 = vset.pattern.permute.xlu0 0
      %604 = vperm.xlu0 %603, %v578
      %v605 = vpop.permute.xlu0 %604
      %608 = vset.pattern.permute.xlu0 0
      %609 = vperm.xlu0 %608, %v579
      %v610 = vpop.permute.xlu0 %609
      %613 = vset.pattern.permute.xlu0 0
      %614 = vperm.xlu0 %613, %v580
      %v615 = vpop.permute.xlu0 %614
      %618 = vset.pattern.permute.xlu0 0
      %619 = vperm.xlu0 %618, %v581
      %v620 = vpop.permute.xlu0 %619
      %623 = vset.pattern.permute.xlu0 0
      %624 = vperm.xlu0 %623, %v582
      %v625 = vpop.permute.xlu0 %624
      %628 = vset.pattern.permute.xlu0 0
      %629 = vperm.xlu0 %628, %v583
      %v630 = vpop.permute.xlu0 %629
      %633 = vset.pattern.permute.xlu0 0
      %634 = vperm.xlu0 %633, %v584
      %v635 = vpop.permute.xlu0 %634
      %638 = vset.pattern.permute.xlu0 0
      %639 = vperm.xlu0 %638, %v585
      %v640 = vpop.permute.xlu0 %639
      %643 = vset.pattern.permute.xlu0 0
      %644 = vperm.xlu0 %643, %v586
      %v645 = vpop.permute.xlu0 %644
      %648 = vset.pattern.permute.xlu0 0
      %649 = vperm.xlu0 %648, %v587
      %v650 = vpop.permute.xlu0 %649
      %653 = vset.pattern.permute.xlu0 0
      %654 = vperm.xlu0 %653, %v588
      %v655 = vpop.permute.xlu0 %654
      %658 = vset.pattern.permute.xlu0 0
      %659 = vperm.xlu0 %658, %v589
      %v660 = vpop.permute.xlu0 %659
      %663 = vset.pattern.permute.xlu0 0
      %664 = vperm.xlu0 %663, %v590
      %v665 = vpop.permute.xlu0 %664
      %668 = vset.pattern.permute.xlu0 0
      %669 = vperm.xlu0 %668, %v591
      %v670 = vpop.permute.xlu0 %669
      %673 = vset.pattern.permute.xlu0 0
      %674 = vperm.xlu0 %673, %v592
      %v675 = vpop.permute.xlu0 %674
      %678 = vset.pattern.permute.xlu0 0
      %679 = vperm.xlu0 %678, %v593
      %v680 = vpop.permute.xlu0 %679
      %683 = vset.pattern.permute.xlu0 0
      %684 = vperm.xlu0 %683, %v594
      %v685 = vpop.permute.xlu0 %684
      %688 = vset.pattern.permute.xlu0 0
      %689 = vperm.xlu0 %688, %v595
      %v690 = vpop.permute.xlu0 %689
      %693 = vset.pattern.permute.xlu0 0
      %694 = vperm.xlu0 %693, %v596
      %v695 = vpop.permute.xlu0 %694
      %698 = vset.pattern.permute.xlu0 0
      %699 = vperm.xlu0 %698, %v597
      %v700 = vpop.permute.xlu0 %699
      %703 = vset.pattern.permute.xlu0 0
      %704 = vperm.xlu0 %703, %v598
      %v705 = vpop.permute.xlu0 %704
      %708 = vset.pattern.permute.xlu0 0
      %709 = vperm.xlu0 %708, %v599
      %v710 = vpop.permute.xlu0 %709
      %713 = vset.pattern.permute.xlu0 0
      %714 = vperm.xlu0 %713, %v600
      %v715 = vpop.permute.xlu0 %714
      %718 = vset.pattern.permute.xlu0 0
      %719 = vperm.xlu0 %718, %v601
      %v720 = vpop.permute.xlu0 %719
      %v722 = vadd.f32 %v554, %v605
      %v723 = vadd.f32 %v555, %v610
      %v724 = vadd.f32 %v556, %v615
      %v725 = vadd.f32 %v557, %v620
      %v726 = vadd.f32 %v558, %v625
      %v727 = vadd.f32 %v559, %v630
      %v728 = vadd.f32 %v560, %v635
      %v729 = vadd.f32 %v561, %v640
      %v730 = vadd.f32 %v562, %v645
      %v731 = vadd.f32 %v563, %v650
      %v732 = vadd.f32 %v564, %v655
      %v733 = vadd.f32 %v565, %v660
      %v734 = vadd.f32 %v566, %v665
      %v735 = vadd.f32 %v567, %v670
      %v736 = vadd.f32 %v568, %v675
      %v737 = vadd.f32 %v569, %v680
      %v738 = vadd.f32 %v570, %v685
      %v739 = vadd.f32 %v571, %v690
      %v740 = vadd.f32 %v572, %v695
      %v741 = vadd.f32 %v573, %v700
      %v742 = vadd.f32 %v574, %v705
      %v743 = vadd.f32 %v575, %v710
      %v744 = vadd.f32 %v576, %v715
      %v745 = vadd.f32 %v577, %v720
      %746 = vst.msk [vmem:[%s201] sm:$0xff] %vm226, %v722
      %747 = vst.msk [vmem:[%s201 + $0x8] sm:$0xff] %vm226, %v723
      %748 = vst.msk [vmem:[%s201 + $0x10] sm:$0xff] %vm226, %v724
      %749 = vst.msk [vmem:[%s201 + $0x18] sm:$0xff] %vm226, %v725
      %750 = vst.msk [vmem:[%s201 + $0x20] sm:$0xff] %vm226, %v726
      %751 = vst.msk [vmem:[%s201 + $0x28] sm:$0xff] %vm226, %v727
      %752 = vst.msk [vmem:[%s201 + $0x30] sm:$0xff] %vm226, %v728
      %753 = vst.msk [vmem:[%s201 + $0x38] sm:$0xff] %vm226, %v729
      %754 = vst.msk [vmem:[%s201 + $0x40] sm:$0xff] %vm226, %v730
      %755 = vst.msk [vmem:[%s201 + $0x48] sm:$0xff] %vm226, %v731
      %756 = vst.msk [vmem:[%s201 + $0x50] sm:$0xff] %vm226, %v732
      %757 = vst.msk [vmem:[%s201 + $0x58] sm:$0xff] %vm226, %v733
      %758 = vst.msk [vmem:[%s201 + $0x60] sm:$0xff] %vm226, %v734
      %759 = vst.msk [vmem:[%s201 + $0x68] sm:$0xff] %vm226, %v735
      %760 = vst.msk [vmem:[%s201 + $0x70] sm:$0xff] %vm226, %v736
      %761 = vst.msk [vmem:[%s201 + $0x78] sm:$0xff] %vm226, %v737
      %762 = vst.msk [vmem:[%s201 + $0x80] sm:$0xff] %vm226, %v738
      %763 = vst.msk [vmem:[%s201 + $0x88] sm:$0xff] %vm226, %v739
      %764 = vst.msk [vmem:[%s201 + $0x90] sm:$0xff] %vm226, %v740
      %765 = vst.msk [vmem:[%s201 + $0x98] sm:$0xff] %vm226, %v741
      %766 = vst.msk [vmem:[%s201 + $0xa0] sm:$0xff] %vm226, %v742
      %767 = vst.msk [vmem:[%s201 + $0xa8] sm:$0xff] %vm226, %v743
      %768 = vst.msk [vmem:[%s201 + $0xb0] sm:$0xff] %vm226, %v744
      %769 = vst.msk [vmem:[%s201 + $0xb8] sm:$0xff] %vm226, %v745
      %p770 = scmp.lt.s32.totalorder %s18, 1
      %s771 = scalar_select %p770, %s18, 1
      %p772 = scmp.lt.s32.totalorder %s19, 0
      %s773 = scalar_select %p772, %s19, 0
      %s774 = smul.addr %s771, 24
      %s775 = sadd.s32 %s773, %s774
      %s776 = smul.addr %s775, 8
      %s777 = scalar_lea.vmem %s3, %s776
      // Predicated region
      $region33: #{tpu_custom_call.1} parent=31 // pred_check
        %p778 = pneg %p116
      $region34: #{tpu_custom_call.1} parent=31 // pred_check_branch
        %780 = sbr.rel (%p778) target = $region36
      $region35: #{tpu_custom_call.1} parent=31 // pred_region
        _
      $region36: #{tpu_custom_call.1} parent=31 // pred_fallthru
        _
    $region32: #{tpu_custom_call.1} parent=5 // pred_fallthru
      _
    %p781 = scmp.le.s32.totalorder 2, %s9
    // Predicated region
    $region37: #{tpu_custom_call.1} parent=5 // pred_check
      %p782 = pneg %p781
    $region38: #{tpu_custom_call.1} parent=5 // pred_check_branch
      %784 = sbr.rel (%p782) target = $region40
    $region39: #{tpu_custom_call.1} parent=5 // pred_region
      %s785 = ssub.s32 %s9, 2
      // Predicated region
      $region41: #{tpu_custom_call.1} parent=39 // pred_check
        %p786 = pneg %p122
      $region42: #{tpu_custom_call.1} parent=39 // pred_check_branch
        %788 = sbr.rel (%p786) target = $region44
      $region43: #{tpu_custom_call.1} parent=39 // pred_region
        %p789 = scmp.lt.s32.totalorder %s20, 1
        %s790 = scalar_select %p789, %s20, 1
        %p791 = scmp.lt.s32.totalorder %s21, 0
        %s792 = scalar_select %p791, %s21, 0
        %s793 = smul.addr %s790, 24
        %s794 = sadd.s32 %s792, %s793
        %s795 = smul.addr %s794, 8
        %s796 = scalar_lea.vmem %s3, %s795
      $region44: #{tpu_custom_call.1} parent=39 // pred_fallthru
        _
    $region40: #{tpu_custom_call.1} parent=5 // pred_fallthru
      _
  $region6: #{tpu_custom_call.1} parent=0 // loop_footer
    %s13 = sadd.s32 1, %s9
  $region7: #{tpu_custom_call.1} parent=0 // loop_footer_branch
    %8 = sbr.rel target = $region3
  $region8: #{tpu_custom_call.1} parent=0 // loop_exit
    _

</llo_original>
